<compile_context>
chip_gen: v7x
topology: tpu7x:2x2x1
jax: 0.10.0
libtpu: 0.0.40
codegen_flags: <defaults>
</compile_context>

<pallas_src>
import functools
import math

import jax
import jax.numpy as jnp
from jax.experimental import pallas as pl
from jax.experimental.pallas import tpu as pltpu

LN_EPS = 1e-5                           # torch.nn.LayerNorm default
_VMEM_TILE_BUDGET = 24 * 1024 * 1024    # accounted bytes per grid step
_VMEM_LIMIT_BYTES = 32 * 1024 * 1024    # safe scoped request on v5e / v6e / v7x


def _ln_kernel(x_ref, gamma_ref, beta_ref, *out_refs, fuse, k_bands, ws, w_w):
    """x_ref: (1, C, HWB) NCHW tile.
    out_refs[0]: shortcut tile in NHWC byte order -- (1, HWB, C) or lane-packed
                 (1, HWB*C//128, 128).
    out_refs[1] (fuse only): window-partitioned tile, same packed shape."""
    o_ref = out_refs[0]
    x = x_ref[0].astype(jnp.float32)                   # (C, HWB), lanes dense
    # Two-pass LayerNorm statistics over channels (sublane reduction).
    mean = jnp.mean(x, axis=0, keepdims=True)          # (1, HWB)
    xc = x - mean
    var = jnp.mean(xc * xc, axis=0, keepdims=True)     # biased, like torch
    inv = jax.lax.rsqrt(var + LN_EPS)
    # Affine + output cast BEFORE the transpose: fully lane-dense VALU work.
    g = gamma_ref[...].astype(jnp.float32)             # (C, 1)
    b = beta_ref[...].astype(jnp.float32)              # (C, 1)
    y = (xc * inv * g + b).astype(o_ref.dtype)         # (C, HWB)
    # NCHW -> NHWC for this tile: one 2-D transpose (XLU), then an optional
    # lane-packing relayout so stores are unmasked 128-lane stores.
    z = y.T.reshape(o_ref.shape[1:])                   # (HWB, C) or (HWB*C//128, 128)
    o_ref[0] = z
    if fuse:
        # window_size * C == 128: each packed row is one in-window row; the window
        # partition is the row permutation (band, r, j) -> (band, j, r).
        w_ref = out_refs[1]
        rows = k_bands * ws * w_w
        zw = jnp.transpose(z.reshape(k_bands, ws, w_w, 128), (0, 2, 1, 3))
        w_ref[0] = zw.reshape(rows, 128)


def _largest_aligned_divisor(n, unit, cap):
    """Largest multiple of `unit` that divides n and is <= cap (0 if none)."""
    m = min(cap, n) // unit * unit
    while m >= unit and n % m:
        m -= unit
    return m if m >= unit else 0


def _plan(batch, c, h, w, window_size, itemsize, lane_pack, fuse_windows):
    """Pick (hw_block, pack, fuse); None means 'fall back to plain XLA'."""
    n_hw = h * w
    band = window_size * w
    pack_grp = 128 // c if (c < 128 and 128 % c == 0) else 0
    can_pack = lane_pack and pack_grp > 0
    can_fuse = (fuse_windows and can_pack and window_size * c == 128
                and h % window_size == 0 and w % window_size == 0)

    def per_col(pack, fuse):
        bytes_ = 2 * c * itemsize                      # double-buffered input tile
        bytes_ += 5 * c * 4                            # f32 working copies
        out_c = c if (pack or c % 128 == 0) else pl.cdiv(c, 128) * 128
        bytes_ += (2 if fuse else 1) * 2 * out_c * itemsize
        return bytes_

    if n_hw % 128 == 0:
        unit = 128
        if can_fuse:
            unit = 128 * band // math.gcd(128, band)   # whole window-row bands
            if n_hw % unit != 0:
                can_fuse = False
                unit = 128
        cap = max(unit, _VMEM_TILE_BUDGET // per_col(can_pack, can_fuse))
        hw_block = _largest_aligned_divisor(n_hw, unit, cap) or unit
        # v7x has two TensorCores: keep at least 2 parallel grid cells.
        if batch * (n_hw // hw_block) < 2:
            half = _largest_aligned_divisor(n_hw, unit, n_hw // 2)
            if half:
                hw_block = half
    else:
        # Partial last-dim blocks are illegal; use the full spatial extent (legal for
        # any size) if it fits the VMEM budget, else fall back to XLA.
        hw_block = n_hw
        if per_col(can_pack, can_fuse) * n_hw > _VMEM_TILE_BUDGET:
            return None

    if can_pack and hw_block % pack_grp != 0:
        can_pack = False
        can_fuse = False
    if can_pack:
        rows = hw_block * c // 128
        if rows % 8 != 0 and hw_block != n_hw:
            can_pack = False
            can_fuse = False
    return hw_block, can_pack, can_fuse


def window_partition(x, window_size, h_w, w_w):
    # x: (B, H, W, C) -> (num_windows*B, window_size, window_size, C)
    B, H, W, C = x.shape
    x = x.reshape(B, h_w, window_size, w_w, window_size, C)
    return jnp.transpose(x, (0, 1, 3, 2, 4, 5)).reshape(-1, window_size, window_size, C)


def _layernorm_xla(x_nchw, gamma, beta):
    x = jnp.transpose(x_nchw, (0, 2, 3, 1)).astype(jnp.float32)
    mean = jnp.mean(x, axis=-1, keepdims=True)
    var = jnp.mean((x - mean) ** 2, axis=-1, keepdims=True)
    y = (x - mean) * jax.lax.rsqrt(var + LN_EPS) * gamma + beta
    return y.astype(x_nchw.dtype)


def window_forward(x_nchw, gamma, beta, window_size, *, lane_pack=True, fuse_windows=True):
    """Equivalent of window.forward.  x_nchw: (B, C, H, W) -> (x_windows, shortcut)."""
    B, C, H, W = x_nchw.shape
    n_hw = H * W
    h_w, w_w = H // window_size, W // window_size

    plan = _plan(B, C, H, W, window_size, jnp.dtype(x_nchw.dtype).itemsize,
                 lane_pack, fuse_windows)
    if plan is None:
        # TODO(synk): large non-128-multiple spatial maps need an Element/strided
        # chunking path; plain XLA fallback for now.
        shortcut = _layernorm_xla(x_nchw, gamma, beta)
        x_windows = window_partition(shortcut, window_size, h_w, w_w)
        return x_windows.reshape(-1, window_size * window_size, C), shortcut

    hw_block, pack, fuse = plan
    n_s = n_hw // hw_block
    k_bands = hw_block // (window_size * W) if fuse else 0

    x3 = x_nchw.reshape(B, C, n_hw)          # free reshape; still NCHW bytes in HBM
    gamma_c = gamma.reshape(C, 1)
    beta_c = beta.reshape(C, 1)

    if pack:
        out_block = (1, hw_block * C // 128, 128)
        out_dims = (B, n_hw * C // 128, 128)
    else:
        out_block = (1, hw_block, C)
        out_dims = (B, n_hw, C)

    out_shapes = [jax.ShapeDtypeStruct(out_dims, x_nchw.dtype)]
    out_specs = [pl.BlockSpec(out_block, lambda b, s: (b, s, 0))]
    if fuse:
        out_shapes.append(jax.ShapeDtypeStruct(out_dims, x_nchw.dtype))
        out_specs.append(pl.BlockSpec(out_block, lambda b, s: (b, s, 0)))

    kernel = functools.partial(_ln_kernel, fuse=fuse, k_bands=k_bands,
                               ws=window_size, w_w=w_w)

    outs = pl.pallas_call(
        kernel,
        out_shape=tuple(out_shapes) if fuse else out_shapes[0],
        grid_spec=pltpu.PrefetchScalarGridSpec(
            num_scalar_prefetch=0,
            grid=(B, n_s),
            in_specs=[
                pl.BlockSpec((1, C, hw_block), lambda b, s: (b, 0, s)),
                pl.BlockSpec((C, 1), lambda b, s: (0, 0)),
                pl.BlockSpec((C, 1), lambda b, s: (0, 0)),
            ],
            out_specs=out_specs if fuse else out_specs[0],
        ),
        compiler_params=pltpu.CompilerParams(
            dimension_semantics=("parallel", "parallel"),
            vmem_limit_bytes=_VMEM_LIMIT_BYTES,
        ),
    )(x3, gamma_c, beta_c)

    if fuse:
        shortcut_flat, windows_flat = outs
        shortcut = shortcut_flat.reshape(B, H, W, C)                      # free reshape
        x_windows = windows_flat.reshape(-1, window_size * window_size, C)  # free reshape
    else:
        shortcut = outs.reshape(B, H, W, C)                               # free reshape
        x_windows = window_partition(shortcut, window_size, h_w, w_w).reshape(
            -1, window_size * window_size, C)
    return x_windows, shortcut


if __name__ == "__main__":
    key = jax.random.PRNGKey(0)
    k_x, k_g, k_b = jax.random.split(key, 3)

    B, C, H, W = 2, 32, 16, 16   # dim = C = 32
    window_size = 4

    x = jax.random.normal(k_x, (B, C, H, W), dtype=jnp.float32)
    gamma = 1.0 + 0.1 * jax.random.normal(k_g, (C,), dtype=jnp.float32)
    beta = 0.1 * jax.random.normal(k_b, (C,), dtype=jnp.float32)

    # Capability ladder: the lane-packing relayout and the fused window reorder rely
    # on in-kernel reshapes/transposes that may not lower on every toolchain; probe
    # at compile time and degrade gracefully (last rung is the known-good plain path).
    configs = ((True, True), (True, False), (False, False))
    outs = None
    for cfg in configs:
        lane_pack, fuse_windows = cfg
        fwd = jax.jit(functools.partial(window_forward, window_size=window_size,
                                        lane_pack=lane_pack, fuse_windows=fuse_windows))
        try:
            outs = fwd(x, gamma, beta)
            jax.block_until_ready(outs)
            break
        except Exception:  # capability probe failed -> next rung
            if cfg == configs[-1]:
                raise
    x_windows, shortcut = outs

    # Pure-JAX reference (two-pass LayerNorm, exactly like torch.nn.LayerNorm).
    x_nhwc = jnp.transpose(x, (0, 2, 3, 1))
    mean = jnp.mean(x_nhwc, axis=-1, keepdims=True)
    var = jnp.mean((x_nhwc - mean) ** 2, axis=-1, keepdims=True)
    ref_norm = (x_nhwc - mean) / jnp.sqrt(var + LN_EPS) * gamma + beta
    h_w, w_w = H // window_size, W // window_size
    ref_win = window_partition(ref_norm, window_size, h_w, w_w).reshape(
        -1, window_size * window_size, C)

    assert shortcut.shape == (B, H, W, C)
    assert x_windows.shape == (B * h_w * w_w, window_size * window_size, C)
    assert jnp.allclose(shortcut, ref_norm, atol=2e-5, rtol=1e-5), "layernorm/shortcut mismatch"
    assert jnp.allclose(x_windows, ref_win, atol=2e-5, rtol=1e-5), "window partition mismatch"

    print("KERNEL_OK")
</pallas_src>

<mosaic_0001>
module attributes {stable_mosaic.version = 11 : i64} {
  func.func @_ln_kernel(%arg0: i32, %arg1: i32, %arg2: memref<1x32x256xf32, #tpu.memory_space<vmem>>, %arg3: memref<32x1xf32, #tpu.memory_space<vmem>>, %arg4: memref<32x1xf32, #tpu.memory_space<vmem>>, %arg5: memref<1x64x128xf32, #tpu.memory_space<vmem>>, %arg6: memref<1x64x128xf32, #tpu.memory_space<vmem>>) attributes {dimension_semantics = [#tpu.dimension_semantics<parallel>, #tpu.dimension_semantics<parallel>], iteration_bounds = array<i64: 2, 1>, scalar_prefetch = 0 : i64, scratch_operands = 0 : i64, tpu.core_type = #tpu.core_type<tc>, window_params = [{transform_indices = @transform_0, window_bounds = array<i64: 1, 32, 256>}, {pipeline_mode = #tpu.pipeline_mode<synchronous>, transform_indices = @transform_1, window_bounds = array<i64: 32, 1>}, {pipeline_mode = #tpu.pipeline_mode<synchronous>, transform_indices = @transform_2, window_bounds = array<i64: 32, 1>}, {transform_indices = @transform_3, window_bounds = array<i64: 1, 64, 128>}, {transform_indices = @transform_4, window_bounds = array<i64: 1, 64, 128>}]} {
    %c0 = arith.constant 0 : index
    %c0_0 = arith.constant 0 : index
    %c0_1 = arith.constant 0 : index
    %0 = vector.load %arg2[%c0, %c0_0, %c0_1] : memref<1x32x256xf32, #tpu.memory_space<vmem>>, vector<1x32x256xf32>
    %1 = vector.shape_cast %0 : vector<1x32x256xf32> to vector<32x256xf32>
    %cst = arith.constant dense<0.000000e+00> : vector<256xf32>
    %2 = vector.multi_reduction <add>, %1, %cst [0] : vector<32x256xf32> to vector<256xf32>
    %3 = vector.shape_cast %2 : vector<256xf32> to vector<1x256xf32>
    %cst_2 = arith.constant 3.200000e+01 : f32
    %4 = vector.broadcast %cst_2 : f32 to vector<1x256xf32>
    %5 = arith.divf %3, %4 : vector<1x256xf32>
    %6 = vector.broadcast %5 : vector<1x256xf32> to vector<32x256xf32>
    %7 = arith.subf %1, %6 : vector<32x256xf32>
    %8 = arith.mulf %7, %7 : vector<32x256xf32>
    %cst_3 = arith.constant dense<0.000000e+00> : vector<256xf32>
    %9 = vector.multi_reduction <add>, %8, %cst_3 [0] : vector<32x256xf32> to vector<256xf32>
    %10 = vector.shape_cast %9 : vector<256xf32> to vector<1x256xf32>
    %cst_4 = arith.constant 3.200000e+01 : f32
    %11 = vector.broadcast %cst_4 : f32 to vector<1x256xf32>
    %12 = arith.divf %10, %11 : vector<1x256xf32>
    %cst_5 = arith.constant 9.99999974E-6 : f32
    %13 = vector.broadcast %cst_5 : f32 to vector<1x256xf32>
    %14 = arith.addf %12, %13 : vector<1x256xf32>
    %15 = math.rsqrt %14 : vector<1x256xf32>
    %c0_6 = arith.constant 0 : index
    %c0_7 = arith.constant 0 : index
    %16 = vector.load %arg3[%c0_6, %c0_7] : memref<32x1xf32, #tpu.memory_space<vmem>>, vector<32x1xf32>
    %c0_8 = arith.constant 0 : index
    %c0_9 = arith.constant 0 : index
    %17 = vector.load %arg4[%c0_8, %c0_9] : memref<32x1xf32, #tpu.memory_space<vmem>>, vector<32x1xf32>
    %18 = vector.broadcast %15 : vector<1x256xf32> to vector<32x256xf32>
    %19 = arith.mulf %7, %18 : vector<32x256xf32>
    %20 = vector.broadcast %16 : vector<32x1xf32> to vector<32x256xf32>
    %21 = arith.mulf %19, %20 : vector<32x256xf32>
    %22 = vector.broadcast %17 : vector<32x1xf32> to vector<32x256xf32>
    %23 = arith.addf %21, %22 : vector<32x256xf32>
    %24 = tpu.transpose %23, [1, 0] : vector<32x256xf32> -> vector<256x32xf32>
    %25 = vector.shape_cast %24 : vector<256x32xf32> to vector<64x128xf32>
    %c0_10 = arith.constant 0 : index
    %c0_11 = arith.constant 0 : index
    %c0_12 = arith.constant 0 : index
    %26 = vector.load %arg5[%c0_10, %c0_11, %c0_12] : memref<1x64x128xf32, #tpu.memory_space<vmem>>, vector<1x64x128xf32>
    %27 = vector.shape_cast %26 : vector<1x64x128xf32> to vector<64x128xf32>
    %28 = vector.shape_cast %25 : vector<64x128xf32> to vector<1x64x128xf32>
    tpu.vector_store %arg5[%c0_10, %c0_11, %c0_12], %28 {strides = array<i32>} : memref<1x64x128xf32, #tpu.memory_space<vmem>>, vector<1x64x128xf32>,
    %29 = vector.shape_cast %25 : vector<64x128xf32> to vector<4x4x4x128xf32>
    %30 = tpu.transpose %29, [0, 2, 1, 3] : vector<4x4x4x128xf32> -> vector<4x4x4x128xf32>
    %31 = vector.shape_cast %30 : vector<4x4x4x128xf32> to vector<64x128xf32>
    %c0_13 = arith.constant 0 : index
    %c0_14 = arith.constant 0 : index
    %c0_15 = arith.constant 0 : index
    %32 = vector.load %arg6[%c0_13, %c0_14, %c0_15] : memref<1x64x128xf32, #tpu.memory_space<vmem>>, vector<1x64x128xf32>
    %33 = vector.shape_cast %32 : vector<1x64x128xf32> to vector<64x128xf32>
    %34 = vector.shape_cast %31 : vector<64x128xf32> to vector<1x64x128xf32>
    tpu.vector_store %arg6[%c0_13, %c0_14, %c0_15], %34 {strides = array<i32>} : memref<1x64x128xf32, #tpu.memory_space<vmem>>, vector<1x64x128xf32>,
    return
  }
  func.func @transform_0(%arg0: i32, %arg1: i32) -> (i32, i32, i32) {
    %c0_i32 = arith.constant 0 : i32
    %c0_i32_0 = arith.constant 0 : i32
    return %arg0, %c0_i32, %arg1 : i32, i32, i32
  }
  func.func @transform_1(%arg0: i32, %arg1: i32) -> (i32, i32) {
    %c0_i32 = arith.constant 0 : i32
    %c0_i32_0 = arith.constant 0 : i32
    %c0_i32_1 = arith.constant 0 : i32
    return %c0_i32, %c0_i32_0 : i32, i32
  }
  func.func @transform_2(%arg0: i32, %arg1: i32) -> (i32, i32) {
    %c0_i32 = arith.constant 0 : i32
    %c0_i32_0 = arith.constant 0 : i32
    %c0_i32_1 = arith.constant 0 : i32
    return %c0_i32, %c0_i32_0 : i32, i32
  }
  func.func @transform_3(%arg0: i32, %arg1: i32) -> (i32, i32, i32) {
    %c0_i32 = arith.constant 0 : i32
    %c0_i32_0 = arith.constant 0 : i32
    return %arg0, %arg1, %c0_i32 : i32, i32, i32
  }
  func.func @transform_4(%arg0: i32, %arg1: i32) -> (i32, i32, i32) {
    %c0_i32 = arith.constant 0 : i32
    %c0_i32_0 = arith.constant 0 : i32
    return %arg0, %arg1, %c0_i32 : i32, i32, i32
  }
}

module attributes {stable_mosaic.version = 11 : i64} {
  func.func @_ln_kernel(%arg0: i32, %arg1: i32, %arg2: memref<1x32x256xf32, #tpu.memory_space<vmem>>, %arg3: memref<32x1xf32, #tpu.memory_space<vmem>>, %arg4: memref<32x1xf32, #tpu.memory_space<vmem>>, %arg5: memref<1x64x128xf32, #tpu.memory_space<vmem>>) attributes {dimension_semantics = [#tpu.dimension_semantics<parallel>, #tpu.dimension_semantics<parallel>], iteration_bounds = array<i64: 2, 1>, scalar_prefetch = 0 : i64, scratch_operands = 0 : i64, tpu.core_type = #tpu.core_type<tc>, window_params = [{transform_indices = @transform_0, window_bounds = array<i64: 1, 32, 256>}, {pipeline_mode = #tpu.pipeline_mode<synchronous>, transform_indices = @transform_1, window_bounds = array<i64: 32, 1>}, {pipeline_mode = #tpu.pipeline_mode<synchronous>, transform_indices = @transform_2, window_bounds = array<i64: 32, 1>}, {transform_indices = @transform_3, window_bounds = array<i64: 1, 64, 128>}]} {
    %c0 = arith.constant 0 : index
    %c0_0 = arith.constant 0 : index
    %c0_1 = arith.constant 0 : index
    %0 = vector.load %arg2[%c0, %c0_0, %c0_1] : memref<1x32x256xf32, #tpu.memory_space<vmem>>, vector<1x32x256xf32>
    %1 = vector.shape_cast %0 : vector<1x32x256xf32> to vector<32x256xf32>
    %cst = arith.constant dense<0.000000e+00> : vector<256xf32>
    %2 = vector.multi_reduction <add>, %1, %cst [0] : vector<32x256xf32> to vector<256xf32>
    %3 = vector.shape_cast %2 : vector<256xf32> to vector<1x256xf32>
    %cst_2 = arith.constant 3.200000e+01 : f32
    %4 = vector.broadcast %cst_2 : f32 to vector<1x256xf32>
    %5 = arith.divf %3, %4 : vector<1x256xf32>
    %6 = vector.broadcast %5 : vector<1x256xf32> to vector<32x256xf32>
    %7 = arith.subf %1, %6 : vector<32x256xf32>
    %8 = arith.mulf %7, %7 : vector<32x256xf32>
    %cst_3 = arith.constant dense<0.000000e+00> : vector<256xf32>
    %9 = vector.multi_reduction <add>, %8, %cst_3 [0] : vector<32x256xf32> to vector<256xf32>
    %10 = vector.shape_cast %9 : vector<256xf32> to vector<1x256xf32>
    %cst_4 = arith.constant 3.200000e+01 : f32
    %11 = vector.broadcast %cst_4 : f32 to vector<1x256xf32>
    %12 = arith.divf %10, %11 : vector<1x256xf32>
    %cst_5 = arith.constant 9.99999974E-6 : f32
    %13 = vector.broadcast %cst_5 : f32 to vector<1x256xf32>
    %14 = arith.addf %12, %13 : vector<1x256xf32>
    %15 = math.rsqrt %14 : vector<1x256xf32>
    %c0_6 = arith.constant 0 : index
    %c0_7 = arith.constant 0 : index
    %16 = vector.load %arg3[%c0_6, %c0_7] : memref<32x1xf32, #tpu.memory_space<vmem>>, vector<32x1xf32>
    %c0_8 = arith.constant 0 : index
    %c0_9 = arith.constant 0 : index
    %17 = vector.load %arg4[%c0_8, %c0_9] : memref<32x1xf32, #tpu.memory_space<vmem>>, vector<32x1xf32>
    %18 = vector.broadcast %15 : vector<1x256xf32> to vector<32x256xf32>
    %19 = arith.mulf %7, %18 : vector<32x256xf32>
    %20 = vector.broadcast %16 : vector<32x1xf32> to vector<32x256xf32>
    %21 = arith.mulf %19, %20 : vector<32x256xf32>
    %22 = vector.broadcast %17 : vector<32x1xf32> to vector<32x256xf32>
    %23 = arith.addf %21, %22 : vector<32x256xf32>
    %24 = tpu.transpose %23, [1, 0] : vector<32x256xf32> -> vector<256x32xf32>
    %25 = vector.shape_cast %24 : vector<256x32xf32> to vector<64x128xf32>
    %c0_10 = arith.constant 0 : index
    %c0_11 = arith.constant 0 : index
    %c0_12 = arith.constant 0 : index
    %26 = vector.load %arg5[%c0_10, %c0_11, %c0_12] : memref<1x64x128xf32, #tpu.memory_space<vmem>>, vector<1x64x128xf32>
    %27 = vector.shape_cast %26 : vector<1x64x128xf32> to vector<64x128xf32>
    %28 = vector.shape_cast %25 : vector<64x128xf32> to vector<1x64x128xf32>
    tpu.vector_store %arg5[%c0_10, %c0_11, %c0_12], %28 {strides = array<i32>} : memref<1x64x128xf32, #tpu.memory_space<vmem>>, vector<1x64x128xf32>,
    return
  }
  func.func @transform_0(%arg0: i32, %arg1: i32) -> (i32, i32, i32) {
    %c0_i32 = arith.constant 0 : i32
    %c0_i32_0 = arith.constant 0 : i32
    return %arg0, %c0_i32, %arg1 : i32, i32, i32
  }
  func.func @transform_1(%arg0: i32, %arg1: i32) -> (i32, i32) {
    %c0_i32 = arith.constant 0 : i32
    %c0_i32_0 = arith.constant 0 : i32
    %c0_i32_1 = arith.constant 0 : i32
    return %c0_i32, %c0_i32_0 : i32, i32
  }
  func.func @transform_2(%arg0: i32, %arg1: i32) -> (i32, i32) {
    %c0_i32 = arith.constant 0 : i32
    %c0_i32_0 = arith.constant 0 : i32
    %c0_i32_1 = arith.constant 0 : i32
    return %c0_i32, %c0_i32_0 : i32, i32
  }
  func.func @transform_3(%arg0: i32, %arg1: i32) -> (i32, i32, i32) {
    %c0_i32 = arith.constant 0 : i32
    %c0_i32_0 = arith.constant 0 : i32
    return %arg0, %arg1, %c0_i32 : i32, i32, i32
  }
}

module attributes {stable_mosaic.version = 11 : i64} {
  func.func @_ln_kernel(%arg0: i32, %arg1: i32, %arg2: memref<1x32x256xf32, #tpu.memory_space<vmem>>, %arg3: memref<32x1xf32, #tpu.memory_space<vmem>>, %arg4: memref<32x1xf32, #tpu.memory_space<vmem>>, %arg5: memref<1x256x32xf32, #tpu.memory_space<vmem>>) attributes {dimension_semantics = [#tpu.dimension_semantics<parallel>, #tpu.dimension_semantics<parallel>], iteration_bounds = array<i64: 2, 1>, scalar_prefetch = 0 : i64, scratch_operands = 0 : i64, tpu.core_type = #tpu.core_type<tc>, window_params = [{transform_indices = @transform_0, window_bounds = array<i64: 1, 32, 256>}, {pipeline_mode = #tpu.pipeline_mode<synchronous>, transform_indices = @transform_1, window_bounds = array<i64: 32, 1>}, {pipeline_mode = #tpu.pipeline_mode<synchronous>, transform_indices = @transform_2, window_bounds = array<i64: 32, 1>}, {transform_indices = @transform_3, window_bounds = array<i64: 1, 256, 32>}]} {
    %c0 = arith.constant 0 : index
    %c0_0 = arith.constant 0 : index
    %c0_1 = arith.constant 0 : index
    %0 = vector.load %arg2[%c0, %c0_0, %c0_1] : memref<1x32x256xf32, #tpu.memory_space<vmem>>, vector<1x32x256xf32>
    %1 = vector.shape_cast %0 : vector<1x32x256xf32> to vector<32x256xf32>
    %cst = arith.constant dense<0.000000e+00> : vector<256xf32>
    %2 = vector.multi_reduction <add>, %1, %cst [0] : vector<32x256xf32> to vector<256xf32>
    %3 = vector.shape_cast %2 : vector<256xf32> to vector<1x256xf32>
    %cst_2 = arith.constant 3.200000e+01 : f32
    %4 = vector.broadcast %cst_2 : f32 to vector<1x256xf32>
    %5 = arith.divf %3, %4 : vector<1x256xf32>
    %6 = vector.broadcast %5 : vector<1x256xf32> to vector<32x256xf32>
    %7 = arith.subf %1, %6 : vector<32x256xf32>
    %8 = arith.mulf %7, %7 : vector<32x256xf32>
    %cst_3 = arith.constant dense<0.000000e+00> : vector<256xf32>
    %9 = vector.multi_reduction <add>, %8, %cst_3 [0] : vector<32x256xf32> to vector<256xf32>
    %10 = vector.shape_cast %9 : vector<256xf32> to vector<1x256xf32>
    %cst_4 = arith.constant 3.200000e+01 : f32
    %11 = vector.broadcast %cst_4 : f32 to vector<1x256xf32>
    %12 = arith.divf %10, %11 : vector<1x256xf32>
    %cst_5 = arith.constant 9.99999974E-6 : f32
    %13 = vector.broadcast %cst_5 : f32 to vector<1x256xf32>
    %14 = arith.addf %12, %13 : vector<1x256xf32>
    %15 = math.rsqrt %14 : vector<1x256xf32>
    %c0_6 = arith.constant 0 : index
    %c0_7 = arith.constant 0 : index
    %16 = vector.load %arg3[%c0_6, %c0_7] : memref<32x1xf32, #tpu.memory_space<vmem>>, vector<32x1xf32>
    %c0_8 = arith.constant 0 : index
    %c0_9 = arith.constant 0 : index
    %17 = vector.load %arg4[%c0_8, %c0_9] : memref<32x1xf32, #tpu.memory_space<vmem>>, vector<32x1xf32>
    %18 = vector.broadcast %15 : vector<1x256xf32> to vector<32x256xf32>
    %19 = arith.mulf %7, %18 : vector<32x256xf32>
    %20 = vector.broadcast %16 : vector<32x1xf32> to vector<32x256xf32>
    %21 = arith.mulf %19, %20 : vector<32x256xf32>
    %22 = vector.broadcast %17 : vector<32x1xf32> to vector<32x256xf32>
    %23 = arith.addf %21, %22 : vector<32x256xf32>
    %24 = tpu.transpose %23, [1, 0] : vector<32x256xf32> -> vector<256x32xf32>
    %c0_10 = arith.constant 0 : index
    %c0_11 = arith.constant 0 : index
    %c0_12 = arith.constant 0 : index
    %25 = vector.load %arg5[%c0_10, %c0_11, %c0_12] : memref<1x256x32xf32, #tpu.memory_space<vmem>>, vector<1x256x32xf32>
    %26 = vector.shape_cast %25 : vector<1x256x32xf32> to vector<256x32xf32>
    %27 = vector.shape_cast %24 : vector<256x32xf32> to vector<1x256x32xf32>
    tpu.vector_store %arg5[%c0_10, %c0_11, %c0_12], %27 {strides = array<i32>} : memref<1x256x32xf32, #tpu.memory_space<vmem>>, vector<1x256x32xf32>,
    return
  }
  func.func @transform_0(%arg0: i32, %arg1: i32) -> (i32, i32, i32) {
    %c0_i32 = arith.constant 0 : i32
    %c0_i32_0 = arith.constant 0 : i32
    return %arg0, %c0_i32, %arg1 : i32, i32, i32
  }
  func.func @transform_1(%arg0: i32, %arg1: i32) -> (i32, i32) {
    %c0_i32 = arith.constant 0 : i32
    %c0_i32_0 = arith.constant 0 : i32
    %c0_i32_1 = arith.constant 0 : i32
    return %c0_i32, %c0_i32_0 : i32, i32
  }
  func.func @transform_2(%arg0: i32, %arg1: i32) -> (i32, i32) {
    %c0_i32 = arith.constant 0 : i32
    %c0_i32_0 = arith.constant 0 : i32
    %c0_i32_1 = arith.constant 0 : i32
    return %c0_i32, %c0_i32_0 : i32, i32
  }
  func.func @transform_3(%arg0: i32, %arg1: i32) -> (i32, i32, i32) {
    %c0_i32 = arith.constant 0 : i32
    %c0_i32_0 = arith.constant 0 : i32
    return %arg0, %arg1, %c0_i32 : i32, i32, i32
  }
}

</mosaic_0001>

<llo_original>
// kernel: window_forward.1
$region0: #{window_forward.1}
  #allocation0 [shape = 'u32[]', space=smem, size = 0x4, offset = 0x4, fixed_abs, tag = 'smem constant byte address 0x4 - core index']
  #allocation1 [shape = 'u32[144,128]{1,0:T(1,128)}', space=vmem, size = 0x12000, scoped, tag = 'internal scratch']
  %s0 = inlined_call_operand.vmem [shape: f32[2,32,256], index: 0, kind: input, shape index: {}]
  %s1 = inlined_call_operand.vmem [shape: f32[32,1], index: 1, kind: input, shape index: {}]
  %s2 = inlined_call_operand.vmem [shape: f32[32,1], index: 2, kind: input, shape index: {}]
  %s3 = inlined_call_operand.vmem [shape: f32[2,256,32], index: 3, kind: output, shape index: {}]
  %s4 = sld [smem:[#allocation0]]
  $region45: #{window_forward.1} parent=0
    _
  %s6 = ssub.s32 1, %s4
  %s7 = scalar_select 0, %s6, %s4
  loop: start=0, step=1, limit=4
  $region2: #{window_forward.1} parent=0 // loop_pre_header
    _
  $region3: #{window_forward.1} parent=0 // loop_header
    %s9 = sphi 0, %s13
    %p10 = scmp.ge.s32.totalorder %s9, 4
    %s16 = sphi 0, %s28
    %s17 = sphi 0, %s24
    %s18 = sphi 0, %s16
    %s19 = sphi 0, %s17
    %s20 = sphi 0, %s18
    %s21 = sphi 0, %s19
    %s33 = sphi 0, %s35
    %s36 = sphi 0, %s33
    %s37 = sphi 0, %s36
    %s53 = sphi 0, %s37
    %s57 = sphi 0, %s57
    %s59 = sphi 0, %s57
    %s60 = sphi 0, %s59
    %s74 = sphi 0, %s60
    %s78 = sphi 0, %s78
    %s80 = sphi 0, %s78
    %s81 = sphi 0, %s80
    %s95 = sphi 0, %s81
    %s103 = sphi 0, %s105
    %s106 = sphi 0, %s103
    %s107 = sphi 0, %s106
    %s123 = sphi 0, %s107
  $region4: #{window_forward.1} parent=0 // loop_header_branch
    %12 = sbr.rel (%p10) target = $region8
  $region5: #{window_forward.1} parent=0 // loop_body
    %s14 = ssub.s32 %s9, 1
    %s15 = ssub.s32 %s9, 2
    %s22 = sadd.s32 1, %s17
    %p23 = scmp.ge.s32.totalorder %s22, 1
    %s24 = scalar_select %p23, 0, %s22
    %s25 = sadd.s32 1, %s16
    %s26 = scalar_select %p23, %s25, %s16
    %p27 = scmp.ge.s32.totalorder %s26, 2
    %s28 = scalar_select %p27, 0, %s26
    %s29 = ssub.s32 %s16, %s28
    %s30 = ssub.s32 %s17, %s24
    %s31 = sor.u32 %s29, %s30
    %p32 = scmp.eq.s32.totalorder %s31, 0
    %s34 = sadd.s32 %s33, 1
    %s35 = scalar_select %p32, %s33, %s34
    %p38 = pneg %p32
    %p39 = scmp.eq.s32.totalorder %s9, 1
    %p40 = por %p38, %p39
    %p41 = scmp.ne.s32.totalorder %s33, %s36
    %p42 = scmp.eq.s32.totalorder %s9, 0
    %p43 = por %p41, %p42
    %p44 = scmp.ne.s32.totalorder %s33, %s36
    %p45 = scmp.eq.s32.totalorder %s14, 1
    %p46 = por %p44, %p45
    %p47 = scmp.ne.s32.totalorder %s36, %s37
    %p48 = scmp.eq.s32.totalorder %s14, 0
    %p49 = por %p47, %p48
    %p50 = scmp.ne.s32.totalorder %s36, %s37
    %p51 = scmp.eq.s32.totalorder %s15, 1
    %p52 = por %p50, %p51
    %p54 = scmp.ne.s32.totalorder %s37, %s53
    %p55 = scmp.eq.s32.totalorder %s15, 0
    %p56 = por %p54, %p55
    %s58 = sadd.s32 %s57, 1
    %p61 = scmp.eq.s32.totalorder %s9, 1
    %p62 = scmp.ne.s32.totalorder %s57, %s59
    %p63 = scmp.eq.s32.totalorder %s9, 0
    %p64 = por %p62, %p63
    %p65 = scmp.ne.s32.totalorder %s57, %s59
    %p66 = scmp.eq.s32.totalorder %s14, 1
    %p67 = por %p65, %p66
    %p68 = scmp.ne.s32.totalorder %s59, %s60
    %p69 = scmp.eq.s32.totalorder %s14, 0
    %p70 = por %p68, %p69
    %p71 = scmp.ne.s32.totalorder %s59, %s60
    %p72 = scmp.eq.s32.totalorder %s15, 1
    %p73 = por %p71, %p72
    %p75 = scmp.ne.s32.totalorder %s60, %s74
    %p76 = scmp.eq.s32.totalorder %s15, 0
    %p77 = por %p75, %p76
    %s79 = sadd.s32 %s78, 1
    %p82 = scmp.eq.s32.totalorder %s9, 1
    %p83 = scmp.ne.s32.totalorder %s78, %s80
    %p84 = scmp.eq.s32.totalorder %s9, 0
    %p85 = por %p83, %p84
    %p86 = scmp.ne.s32.totalorder %s78, %s80
    %p87 = scmp.eq.s32.totalorder %s14, 1
    %p88 = por %p86, %p87
    %p89 = scmp.ne.s32.totalorder %s80, %s81
    %p90 = scmp.eq.s32.totalorder %s14, 0
    %p91 = por %p89, %p90
    %p92 = scmp.ne.s32.totalorder %s80, %s81
    %p93 = scmp.eq.s32.totalorder %s15, 1
    %p94 = por %p92, %p93
    %p96 = scmp.ne.s32.totalorder %s81, %s95
    %p97 = scmp.eq.s32.totalorder %s15, 0
    %p98 = por %p96, %p97
    %s99 = ssub.s32 %s16, %s28
    %s100 = ssub.s32 %s17, %s24
    %s101 = sor.u32 %s99, %s100
    %p102 = scmp.eq.s32.totalorder %s101, 0
    %s104 = sadd.s32 %s103, 1
    %s105 = scalar_select %p102, %s103, %s104
    %p108 = pneg %p102
    %p109 = scmp.eq.s32.totalorder %s9, 1
    %p110 = por %p108, %p109
    %p111 = scmp.ne.s32.totalorder %s103, %s106
    %p112 = scmp.eq.s32.totalorder %s9, 0
    %p113 = por %p111, %p112
    %p114 = scmp.ne.s32.totalorder %s103, %s106
    %p115 = scmp.eq.s32.totalorder %s14, 1
    %p116 = por %p114, %p115
    %p117 = scmp.ne.s32.totalorder %s106, %s107
    %p118 = scmp.eq.s32.totalorder %s14, 0
    %p119 = por %p117, %p118
    %p120 = scmp.ne.s32.totalorder %s106, %s107
    %p121 = scmp.eq.s32.totalorder %s15, 1
    %p122 = por %p120, %p121
    %p124 = scmp.ne.s32.totalorder %s107, %s123
    %p125 = scmp.eq.s32.totalorder %s15, 0
    %p126 = por %p124, %p125
    %p127 = scmp.le.s32.totalorder 1, %s9
    %p128 = scmp.lt.s32.totalorder %s9, 3
    %p129 = pnand %p127, %p128
    %p130 = pneg %p129
    // Predicated region
    $region9: #{window_forward.1} parent=5 // pred_check
      _
    $region10: #{window_forward.1} parent=5 // pred_check_branch
      %132 = sbr.rel (%p129) target = $region12
    $region11: #{window_forward.1} parent=5 // pred_region
      %s133 = ssub.s32 %s9, 1
      // Predicated region
      $region13: #{window_forward.1} parent=11 // pred_check
        %p134 = pneg %p70
      $region14: #{window_forward.1} parent=11 // pred_check_branch
        %136 = sbr.rel (%p134) target = $region16
      $region15: #{window_forward.1} parent=11 // pred_region
        _
      $region16: #{window_forward.1} parent=11 // pred_fallthru
        _
      // Predicated region
      $region17: #{window_forward.1} parent=11 // pred_check
        %p137 = pneg %p91
      $region18: #{window_forward.1} parent=11 // pred_check_branch
        %139 = sbr.rel (%p137) target = $region20
      $region19: #{window_forward.1} parent=11 // pred_region
        _
      $region20: #{window_forward.1} parent=11 // pred_fallthru
        _
    $region12: #{window_forward.1} parent=5 // pred_fallthru
      _
    %p140 = scmp.lt.s32.totalorder %s9, 2
    // Predicated region
    $region21: #{window_forward.1} parent=5 // pred_check
      %p141 = pneg %p140
    $region22: #{window_forward.1} parent=5 // pred_check_branch
      %143 = sbr.rel (%p141) target = $region24
    $region23: #{window_forward.1} parent=5 // pred_region
      // Predicated region
      $region25: #{window_forward.1} parent=23 // pred_check
        %p144 = pneg %p43
      $region26: #{window_forward.1} parent=23 // pred_check_branch
        %146 = sbr.rel (%p144) target = $region28
      $region27: #{window_forward.1} parent=23 // pred_region
        %s147 = smul.u32 2, %s17
        %p148 = scmp.lt.s32.totalorder %s16, 1
        %s149 = scalar_select %p148, %s16, 1
        %p150 = scmp.lt.s32.totalorder %s147, 1
        %s151 = scalar_select %p150, %s147, 1
        %s152 = smul.addr %s149, 8
        %s153 = sadd.s32 %s151, %s152
        %s154 = smul.addr %s153, 8
        %s155 = scalar_lea.vmem %s0, %s154
        %s156 = smul.u32 2, %s17
      $region28: #{window_forward.1} parent=23 // pred_fallthru
        _
    $region24: #{window_forward.1} parent=5 // pred_fallthru
      _
    %p157 = scmp.le.s32.totalorder 1, %s9
    %p158 = scmp.lt.s32.totalorder %s9, 3
    %p159 = pnand %p157, %p158
    %p160 = pneg %p159
    // Predicated region
    $region29: #{window_forward.1} parent=5 // pred_check
      _
    $region30: #{window_forward.1} parent=5 // pred_check_branch
      %162 = sbr.rel (%p159) target = $region32
    $region31: #{window_forward.1} parent=5 // pred_region
      %s163 = ssub.s32 %s9, 1
      %s164 = smul.u32 2, %s19
      %p165 = scmp.lt.s32.totalorder %s18, 1
      %s166 = scalar_select %p165, %s18, 1
      %p167 = scmp.lt.s32.totalorder %s164, 1
      %s168 = scalar_select %p167, %s164, 1
      %s169 = smul.addr %s166, 8
      %s170 = sadd.s32 %s168, %s169
      %s171 = smul.addr %s170, 8
      %s172 = scalar_lea.vmem %s0, %s171
      %p173 = pneg %p49
      %p174 = pneg %p46
      %p175 = pneg %p70
      %p176 = pneg %p67
      %p177 = pneg %p91
      %p178 = pneg %p88
      %p179 = pneg %p119
      %p180 = pneg %p116
      %s181 = smul.u32 32, %s19
      %p182 = scmp.lt.s32.totalorder %s18, 1
      %s183 = scalar_select %p182, %s18, 1
      %p184 = scmp.lt.s32.totalorder %s181, 31
      %s185 = scalar_select %p184, %s181, 31
      %s186 = smul.addr %s183, 32
      %s187 = sadd.s32 %s185, %s186
      %s188 = smul.addr %s187, 8
      %s189 = scalar_lea.vmem %s3, %s188
      %s190 = smul.u32 2, %s19
      %p191 = scmp.lt.s32.totalorder %s18, 1
      %s192 = scalar_select %p191, %s18, 1
      %p193 = scmp.lt.s32.totalorder %s190, 1
      %s194 = scalar_select %p193, %s190, 1
      %s195 = smul.addr %s192, 8
      %s196 = sadd.s32 %s194, %s195
      %s197 = smul.addr %s196, 8
      %s198 = scalar_lea.vmem %s0, %s197
      %s199 = smul.u32 2, %s19
      %s200 = smul.u32 32, %s19
      %p201 = scmp.lt.s32.totalorder %s18, 1
      %s202 = scalar_select %p201, %s18, 1
      %p203 = scmp.lt.s32.totalorder %s200, 31
      %s204 = scalar_select %p203, %s200, 31
      %s205 = smul.addr %s202, 32
      %s206 = sadd.s32 %s204, %s205
      %s207 = smul.addr %s206, 8
      %s208 = scalar_lea.vmem %s3, %s207
      %s209 = smul.u32 32, %s19
      %v210 = vld [vmem:[%s198] sm:$0xff]
      %v211 = vld [vmem:[%s198 + $0x8] sm:$0xff]
      %v212 = vld [vmem:[%s198 + $0x10] sm:$0xff]
      %v213 = vld [vmem:[%s198 + $0x18] sm:$0xff]
      %v214 = vld [vmem:[%s198 + $0x20] sm:$0xff]
      %v215 = vld [vmem:[%s198 + $0x28] sm:$0xff]
      %v216 = vld [vmem:[%s198 + $0x30] sm:$0xff]
      %v217 = vld [vmem:[%s198 + $0x38] sm:$0xff]
      %v218 = vadd.f32 %v210, %v212
      %v219 = vadd.f32 %v218, %v214
      %v220 = vadd.f32 %v219, %v216
      %v221 = vrot.slane %v220, 4
      %v222 = vadd.f32 %v220, %v221
      %v223 = vrot.slane %v222, 2
      %v224 = vadd.f32 %v222, %v223
      %v225 = vrot.slane %v224, 1
      %v226 = vadd.f32 %v224, %v225
      %v227 = vadd.f32 %v211, %v213
      %v228 = vadd.f32 %v227, %v215
      %v229 = vadd.f32 %v228, %v217
      %v230 = vrot.slane %v229, 4
      %v231 = vadd.f32 %v229, %v230
      %v232 = vrot.slane %v231, 2
      %v233 = vadd.f32 %v231, %v232
      %v234 = vrot.slane %v233, 1
      %v235 = vadd.f32 %v233, %v234
      %v236 = vrcp.pop 32.0
      %v237 = vmul.f32 %v226, %v236
      %v238 = vmul.f32 %v235, %v236
      %v239 = vsub.f32 %v210, %v237
      %v240 = vsub.f32 %v211, %v238
      %v241 = vsub.f32 %v212, %v237
      %v242 = vsub.f32 %v213, %v238
      %v243 = vsub.f32 %v214, %v237
      %v244 = vsub.f32 %v215, %v238
      %v245 = vsub.f32 %v216, %v237
      %v246 = vsub.f32 %v217, %v238
      %v247 = vmul.f32 %v239, %v239
      %v248 = vmul.f32 %v240, %v240
      %v249 = vmul.f32 %v241, %v241
      %v250 = vmul.f32 %v242, %v242
      %v251 = vmul.f32 %v243, %v243
      %v252 = vmul.f32 %v244, %v244
      %v253 = vmul.f32 %v245, %v245
      %v254 = vmul.f32 %v246, %v246
      %v255 = vadd.f32 %v247, %v249
      %v256 = vadd.f32 %v255, %v251
      %v257 = vadd.f32 %v256, %v253
      %v258 = vrot.slane %v257, 4
      %v259 = vadd.f32 %v257, %v258
      %v260 = vrot.slane %v259, 2
      %v261 = vadd.f32 %v259, %v260
      %v262 = vrot.slane %v261, 1
      %v263 = vadd.f32 %v261, %v262
      %v264 = vadd.f32 %v248, %v250
      %v265 = vadd.f32 %v264, %v252
      %v266 = vadd.f32 %v265, %v254
      %v267 = vrot.slane %v266, 4
      %v268 = vadd.f32 %v266, %v267
      %v269 = vrot.slane %v268, 2
      %v270 = vadd.f32 %v268, %v269
      %v271 = vrot.slane %v270, 1
      %v272 = vadd.f32 %v270, %v271
      %v273 = vmul.f32 %v263, %v236
      %v274 = vmul.f32 %v272, %v236
      %v275 = vadd.f32 %v273, 1e-05
      %v276 = vadd.f32 %v274, 1e-05
      %v277 = vrsqrt.pop %v275
      %v278 = vrsqrt.pop %v276
      %v279 = vld [vmem:[%s1] sm:$0xff]
      %v280 = vld [vmem:[%s1 + $0x8] sm:$0xff]
      %v281 = vld [vmem:[%s1 + $0x10] sm:$0xff]
      %v282 = vld [vmem:[%s1 + $0x18] sm:$0xff]
      %v283 = vld [vmem:[%s2] sm:$0xff]
      %v284 = vld [vmem:[%s2 + $0x8] sm:$0xff]
      %v285 = vld [vmem:[%s2 + $0x10] sm:$0xff]
      %v286 = vld [vmem:[%s2 + $0x18] sm:$0xff]
      %v287 = vmul.f32 %v239, %v277
      %v288 = vmul.f32 %v240, %v278
      %v289 = vmul.f32 %v241, %v277
      %v290 = vmul.f32 %v242, %v278
      %v291 = vmul.f32 %v243, %v277
      %v292 = vmul.f32 %v244, %v278
      %v293 = vmul.f32 %v245, %v277
      %v294 = vmul.f32 %v246, %v278
      %296 = vset.pattern.permute.xlu0 0
      %297 = vperm.xlu0 %296, %v279
      %v298 = vpop.permute.xlu0 %297
      %301 = vset.pattern.permute.xlu0 0
      %302 = vperm.xlu0 %301, %v280
      %v303 = vpop.permute.xlu0 %302
      %306 = vset.pattern.permute.xlu0 0
      %307 = vperm.xlu0 %306, %v281
      %v308 = vpop.permute.xlu0 %307
      %311 = vset.pattern.permute.xlu0 0
      %312 = vperm.xlu0 %311, %v282
      %v313 = vpop.permute.xlu0 %312
      %v315 = vmul.f32 %v287, %v298
      %v316 = vmul.f32 %v288, %v298
      %v317 = vmul.f32 %v289, %v303
      %v318 = vmul.f32 %v290, %v303
      %v319 = vmul.f32 %v291, %v308
      %v320 = vmul.f32 %v292, %v308
      %v321 = vmul.f32 %v293, %v313
      %v322 = vmul.f32 %v294, %v313
      %324 = vset.pattern.permute.xlu0 0
      %325 = vperm.xlu0 %324, %v283
      %v326 = vpop.permute.xlu0 %325
      %329 = vset.pattern.permute.xlu0 0
      %330 = vperm.xlu0 %329, %v284
      %v331 = vpop.permute.xlu0 %330
      %334 = vset.pattern.permute.xlu0 0
      %335 = vperm.xlu0 %334, %v285
      %v336 = vpop.permute.xlu0 %335
      %339 = vset.pattern.permute.xlu0 0
      %340 = vperm.xlu0 %339, %v286
      %v341 = vpop.permute.xlu0 %340
      %v343 = vadd.f32 %v315, %v326
      %v344 = vadd.f32 %v316, %v326
      %v345 = vadd.f32 %v317, %v331
      %v346 = vadd.f32 %v318, %v331
      %v347 = vadd.f32 %v319, %v336
      %v348 = vadd.f32 %v320, %v336
      %v349 = vadd.f32 %v321, %v341
      %v350 = vadd.f32 %v322, %v341
      %351 = vxpose.xlu0.b32.start [1/16] %v343, 128
      %352 = vxpose.xlu0.b32.cont [2/16] %v345, 128
      %353 = vxpose.xlu0.b32.cont [3/16] %v347, 128
      %354 = vxpose.xlu0.b32.cont [4/16] %v349, 128
      %355 = vxpose.xlu0.b32.cont [5/16] 0.0, 128
      %356 = vxpose.xlu0.b32.cont [6/16] 0.0, 128
      %357 = vxpose.xlu0.b32.cont [7/16] 0.0, 128
      %358 = vxpose.xlu0.b32.cont [8/16] 0.0, 128
      %359 = vxpose.xlu0.b32.cont [9/16] 0.0, 128
      %360 = vxpose.xlu0.b32.cont [10/16] 0.0, 128
      %361 = vxpose.xlu0.b32.cont [11/16] 0.0, 128
      %362 = vxpose.xlu0.b32.cont [12/16] 0.0, 128
      %363 = vxpose.xlu0.b32.cont [13/16] 0.0, 128
      %364 = vxpose.xlu0.b32.cont [14/16] 0.0, 128
      %365 = vxpose.xlu0.b32.cont [15/16] 0.0, 128
      %366 = vxpose.xlu0.b32.end [16/16] 0.0, 128
      %v367 = vpop.trf.xlu0
      %v368 = vpop.trf.xlu0
      %v369 = vpop.trf.xlu0
      %v370 = vpop.trf.xlu0
      %v371 = vpop.trf.xlu0
      %v372 = vpop.trf.xlu0
      %v373 = vpop.trf.xlu0
      %v374 = vpop.trf.xlu0
      %v375 = vpop.trf.xlu0
      %v376 = vpop.trf.xlu0
      %v377 = vpop.trf.xlu0
      %v378 = vpop.trf.xlu0
      %v379 = vpop.trf.xlu0
      %v380 = vpop.trf.xlu0
      %v381 = vpop.trf.xlu0
      %v382 = vpop.trf.xlu0
      %383 = vxpose.xlu0.b32.start [1/16] %v344, 128
      %384 = vxpose.xlu0.b32.cont [2/16] %v346, 128
      %385 = vxpose.xlu0.b32.cont [3/16] %v348, 128
      %386 = vxpose.xlu0.b32.cont [4/16] %v350, 128
      %387 = vxpose.xlu0.b32.cont [5/16] 0.0, 128
      %388 = vxpose.xlu0.b32.cont [6/16] 0.0, 128
      %389 = vxpose.xlu0.b32.cont [7/16] 0.0, 128
      %390 = vxpose.xlu0.b32.cont [8/16] 0.0, 128
      %391 = vxpose.xlu0.b32.cont [9/16] 0.0, 128
      %392 = vxpose.xlu0.b32.cont [10/16] 0.0, 128
      %393 = vxpose.xlu0.b32.cont [11/16] 0.0, 128
      %394 = vxpose.xlu0.b32.cont [12/16] 0.0, 128
      %395 = vxpose.xlu0.b32.cont [13/16] 0.0, 128
      %396 = vxpose.xlu0.b32.cont [14/16] 0.0, 128
      %397 = vxpose.xlu0.b32.cont [15/16] 0.0, 128
      %398 = vxpose.xlu0.b32.end [16/16] 0.0, 128
      %v399 = vpop.trf.xlu0
      %v400 = vpop.trf.xlu0
      %v401 = vpop.trf.xlu0
      %v402 = vpop.trf.xlu0
      %v403 = vpop.trf.xlu0
      %v404 = vpop.trf.xlu0
      %v405 = vpop.trf.xlu0
      %v406 = vpop.trf.xlu0
      %v407 = vpop.trf.xlu0
      %v408 = vpop.trf.xlu0
      %v409 = vpop.trf.xlu0
      %v410 = vpop.trf.xlu0
      %v411 = vpop.trf.xlu0
      %v412 = vpop.trf.xlu0
      %v413 = vpop.trf.xlu0
      %v414 = vpop.trf.xlu0
      %vm415 = vcmask 261120
      %416 = vst.msk [vmem:[%s208] sm:$0xff] %vm415, %v367
      %417 = vst.msk [vmem:[%s208 + $0x8] sm:$0xff] %vm415, %v368
      %418 = vst.msk [vmem:[%s208 + $0x10] sm:$0xff] %vm415, %v369
      %419 = vst.msk [vmem:[%s208 + $0x18] sm:$0xff] %vm415, %v370
      %420 = vst.msk [vmem:[%s208 + $0x20] sm:$0xff] %vm415, %v371
      %421 = vst.msk [vmem:[%s208 + $0x28] sm:$0xff] %vm415, %v372
      %422 = vst.msk [vmem:[%s208 + $0x30] sm:$0xff] %vm415, %v373
      %423 = vst.msk [vmem:[%s208 + $0x38] sm:$0xff] %vm415, %v374
      %424 = vst.msk [vmem:[%s208 + $0x40] sm:$0xff] %vm415, %v375
      %425 = vst.msk [vmem:[%s208 + $0x48] sm:$0xff] %vm415, %v376
      %426 = vst.msk [vmem:[%s208 + $0x50] sm:$0xff] %vm415, %v377
      %427 = vst.msk [vmem:[%s208 + $0x58] sm:$0xff] %vm415, %v378
      %428 = vst.msk [vmem:[%s208 + $0x60] sm:$0xff] %vm415, %v379
      %429 = vst.msk [vmem:[%s208 + $0x68] sm:$0xff] %vm415, %v380
      %430 = vst.msk [vmem:[%s208 + $0x70] sm:$0xff] %vm415, %v381
      %431 = vst.msk [vmem:[%s208 + $0x78] sm:$0xff] %vm415, %v382
      %432 = vst.msk [vmem:[%s208 + $0x80] sm:$0xff] %vm415, %v399
      %433 = vst.msk [vmem:[%s208 + $0x88] sm:$0xff] %vm415, %v400
      %434 = vst.msk [vmem:[%s208 + $0x90] sm:$0xff] %vm415, %v401
      %435 = vst.msk [vmem:[%s208 + $0x98] sm:$0xff] %vm415, %v402
      %436 = vst.msk [vmem:[%s208 + $0xa0] sm:$0xff] %vm415, %v403
      %437 = vst.msk [vmem:[%s208 + $0xa8] sm:$0xff] %vm415, %v404
      %438 = vst.msk [vmem:[%s208 + $0xb0] sm:$0xff] %vm415, %v405
      %439 = vst.msk [vmem:[%s208 + $0xb8] sm:$0xff] %vm415, %v406
      %440 = vst.msk [vmem:[%s208 + $0xc0] sm:$0xff] %vm415, %v407
      %441 = vst.msk [vmem:[%s208 + $0xc8] sm:$0xff] %vm415, %v408
      %442 = vst.msk [vmem:[%s208 + $0xd0] sm:$0xff] %vm415, %v409
      %443 = vst.msk [vmem:[%s208 + $0xd8] sm:$0xff] %vm415, %v410
      %444 = vst.msk [vmem:[%s208 + $0xe0] sm:$0xff] %vm415, %v411
      %445 = vst.msk [vmem:[%s208 + $0xe8] sm:$0xff] %vm415, %v412
      %446 = vst.msk [vmem:[%s208 + $0xf0] sm:$0xff] %vm415, %v413
      %447 = vst.msk [vmem:[%s208 + $0xf8] sm:$0xff] %vm415, %v414
      %s448 = smul.u32 32, %s19
      %p449 = scmp.lt.s32.totalorder %s18, 1
      %s450 = scalar_select %p449, %s18, 1
      %p451 = scmp.lt.s32.totalorder %s448, 31
      %s452 = scalar_select %p451, %s448, 31
      %s453 = smul.addr %s450, 32
      %s454 = sadd.s32 %s452, %s453
      %s455 = smul.addr %s454, 8
      %s456 = scalar_lea.vmem %s3, %s455
      // Predicated region
      $region33: #{window_forward.1} parent=31 // pred_check
        %p457 = pneg %p116
      $region34: #{window_forward.1} parent=31 // pred_check_branch
        %459 = sbr.rel (%p457) target = $region36
      $region35: #{window_forward.1} parent=31 // pred_region
        %s460 = smul.u32 32, %s19
      $region36: #{window_forward.1} parent=31 // pred_fallthru
        _
    $region32: #{window_forward.1} parent=5 // pred_fallthru
      _
    %p461 = scmp.le.s32.totalorder 2, %s9
    // Predicated region
    $region37: #{window_forward.1} parent=5 // pred_check
      %p462 = pneg %p461
    $region38: #{window_forward.1} parent=5 // pred_check_branch
      %464 = sbr.rel (%p462) target = $region40
    $region39: #{window_forward.1} parent=5 // pred_region
      %s465 = ssub.s32 %s9, 2
      // Predicated region
      $region41: #{window_forward.1} parent=39 // pred_check
        %p466 = pneg %p122
      $region42: #{window_forward.1} parent=39 // pred_check_branch
        %468 = sbr.rel (%p466) target = $region44
      $region43: #{window_forward.1} parent=39 // pred_region
        %s469 = smul.u32 32, %s21
        %p470 = scmp.lt.s32.totalorder %s20, 1
        %s471 = scalar_select %p470, %s20, 1
        %p472 = scmp.lt.s32.totalorder %s469, 31
        %s473 = scalar_select %p472, %s469, 31
        %s474 = smul.addr %s471, 32
        %s475 = sadd.s32 %s473, %s474
        %s476 = smul.addr %s475, 8
        %s477 = scalar_lea.vmem %s3, %s476
      $region44: #{window_forward.1} parent=39 // pred_fallthru
        _
    $region40: #{window_forward.1} parent=5 // pred_fallthru
      _
  $region6: #{window_forward.1} parent=0 // loop_footer
    %s13 = sadd.s32 1, %s9
  $region7: #{window_forward.1} parent=0 // loop_footer_branch
    %8 = sbr.rel target = $region3
  $region8: #{window_forward.1} parent=0 // loop_exit
    _

</llo_original>
